<compile_context>
chip_gen: v7x
topology: tpu7x:2x2x1
jax: 0.10.0
libtpu: 0.0.40
codegen_flags: <defaults>
</compile_context>

<pallas_src>
import jax
import jax.numpy as jnp
from jax.experimental import pallas as pl
from jax.experimental.pallas import tpu as pltpu


def _round_up(x, m):
    return ((x + m - 1) // m) * m


def critic_kernel(s_ref, a_ref, w1s_ref, w1a_ref, b1_ref, w2_ref, b2_ref,
                  w3_ref, b3_ref, o_ref):
    # fc1: split-K accumulation over the fused [state, action] concat.
    s = s_ref[...].astype(jnp.bfloat16)
    a = a_ref[...].astype(jnp.bfloat16)
    h1 = jnp.dot(s, w1s_ref[...], preferred_element_type=jnp.float32)
    h1 = h1 + jnp.dot(a, w1a_ref[...], preferred_element_type=jnp.float32)
    h1 = jnp.maximum(h1 + b1_ref[...], 0.0)                      # f32 bias+ReLU

    # fc2
    h2 = jnp.dot(h1.astype(jnp.bfloat16), w2_ref[...],
                 preferred_element_type=jnp.float32)
    h2 = jnp.maximum(h2 + b2_ref[...], 0.0)                      # f32 bias+ReLU

    # q head (output width 1): VPU multiply + lane reduction instead of an
    # MXU matmul that would use 1/128-1/256 of the array for zero win.
    q = jnp.sum(h2 * w3_ref[...], axis=-1, keepdims=True) + b3_ref[0, 0]
    o_ref[...] = q.astype(o_ref.dtype)


def prepare_params(params, input_dims):
    """One-time conversion of f32 (in, out)-layout params to kernel layout."""
    w1, b1, w2, b2, w3, b3 = params
    w1s = w1[:input_dims].astype(jnp.bfloat16)       # (input_dims, fc1)
    w1a = w1[input_dims:].astype(jnp.bfloat16)       # (n_actions,  fc1)
    w2b = w2.astype(jnp.bfloat16)                    # (fc1, fc2)
    w3row = w3.reshape(1, -1).astype(jnp.float32)    # (1, fc2) row for VPU head
    b3s = b3.reshape(1, 1).astype(jnp.float32)       # (1, 1) scalar -> SMEM
    return (w1s, w1a, b1.astype(jnp.float32), w2b, b2.astype(jnp.float32),
            w3row, b3s)


def _choose_batch_tile(B, block_b):
    """Batch tile selection.

    * B <= 8: one full-batch block (block dim == full array dim is legal).
    * B  > 8: guarantee >= 2 grid steps (so the DMA pipeline and v7x's second
      TensorCore actually engage), each a multiple of 8 sublanes, capped at
      block_b to bound the per-step VMEM footprint.
    """
    if B <= 8:
        return B
    tb = min(block_b, _round_up(pl.cdiv(B, 2), 8))
    return max(tb, 8)


def critic_forward(state, action, kparams, *, block_b=2048):
    """Pallas-fused forward of CriticNetwork: q1(relu(fc2(relu(fc1([s,a])))))."""
    w1s, w1a, b1, w2b, b2, w3row, b3s = kparams
    B, Ds = state.shape
    Da = action.shape[1]

    TB = _choose_batch_tile(B, block_b)
    # Ragged last block is handled by Pallas (masked partial load/store):
    # no wrapper jnp.pad pass over the activations.
    grid = (pl.cdiv(B, TB),)

    def resident(arr):
        # Whole array as one block, same block every grid step -> VMEM-resident.
        # Single-buffered: the block index never changes, so a second pipeline
        # buffer would only waste VMEM.
        return pl.BlockSpec(arr.shape, lambda i: (0,) * arr.ndim,
                            pipeline_mode=pl.Buffered(1))

    out = pl.pallas_call(
        critic_kernel,
        out_shape=jax.ShapeDtypeStruct((B, 1), jnp.float32),
        grid=grid,
        in_specs=[
            pl.BlockSpec((TB, Ds), lambda i: (i, 0)),   # state tile (streamed)
            pl.BlockSpec((TB, Da), lambda i: (i, 0)),   # action tile (streamed)
            resident(w1s), resident(w1a), resident(b1),
            resident(w2b), resident(b2),
            resident(w3row),
            pl.BlockSpec(memory_space=pltpu.MemorySpace.SMEM),  # b3 scalar
        ],
        out_specs=pl.BlockSpec((TB, 1), lambda i: (i, 0)),
        compiler_params=pltpu.CompilerParams(
            dimension_semantics=("parallel",),
            # Explicit scoped-VMEM limit: fits every generation (v5e/v6e have
            # 128 MiB physical, v7x has 64 MiB) and avoids relying on v5e's
            # smaller 16 MiB default when TB / fc dims are scaled up.
            vmem_limit_bytes=32 * 1024 * 1024),
    )(state, action, w1s, w1a, b1, w2b, b2, w3row, b3s)

    return out


def init_params(key, input_dims, n_actions, fc1_dims, fc2_dims):
    """Deterministic init mirroring PyTorch nn.Linear default (U(-1/sqrt(fan_in), +)).
    Weights are stored (in_features, out_features), i.e. transposed vs PyTorch."""
    def linear(key, fan_in, fan_out):
        kw, kb = jax.random.split(key)
        bound = 1.0 / jnp.sqrt(jnp.float32(fan_in))
        w = jax.random.uniform(kw, (fan_in, fan_out), jnp.float32, -bound, bound)
        b = jax.random.uniform(kb, (1, fan_out), jnp.float32, -bound, bound)
        return w, b

    k1, k2, k3 = jax.random.split(key, 3)
    w1, b1 = linear(k1, input_dims + n_actions, fc1_dims)
    w2, b2 = linear(k2, fc1_dims, fc2_dims)
    w3, b3 = linear(k3, fc2_dims, 1)
    return (w1, b1, w2, b2, w3, b3)


def reference_forward_f32(state, action, params):
    w1, b1, w2, b2, w3, b3 = params
    x = jnp.concatenate([state, action], axis=1)
    h1 = jnp.maximum(x @ w1 + b1, 0.0)
    h2 = jnp.maximum(h1 @ w2 + b2, 0.0)
    return h2 @ w3 + b3


def reference_forward_bf16(state, action, kparams):
    """Mirrors the kernel's bf16-matmul / f32-accumulate arithmetic exactly."""
    w1s, w1a, b1, w2b, b2, w3row, b3s = kparams
    s = state.astype(jnp.bfloat16)
    a = action.astype(jnp.bfloat16)
    h1 = (jnp.dot(s, w1s, preferred_element_type=jnp.float32)
          + jnp.dot(a, w1a, preferred_element_type=jnp.float32))
    h1 = jnp.maximum(h1 + b1, 0.0)
    h2 = jnp.dot(h1.astype(jnp.bfloat16), w2b, preferred_element_type=jnp.float32)
    h2 = jnp.maximum(h2 + b2, 0.0)
    return jnp.sum(h2 * w3row, axis=-1, keepdims=True) + b3s[0, 0]


if __name__ == "__main__":
    # Small shapes consistent with the module's forward:
    #   state: (batch, input_dims[0]), action: (batch, n_actions)
    batch = 2
    input_dims = 8
    n_actions = 4
    fc1_dims = 32
    fc2_dims = 32

    key = jax.random.PRNGKey(0)
    ks, ka, kp, ks2, ka2 = jax.random.split(key, 5)
    state = jax.random.normal(ks, (batch, input_dims), jnp.float32)
    action = jax.random.normal(ka, (batch, n_actions), jnp.float32)

    params = init_params(kp, input_dims, n_actions, fc1_dims, fc2_dims)
    kparams = prepare_params(params, input_dims)   # one-time bf16/layout prep

    # --- tiny batch (single full-batch block) ---
    q = critic_forward(state, action, kparams)
    q = jax.block_until_ready(q)
    assert q.shape == (batch, 1)

    # Tight check against a reference mirroring the kernel's bf16/f32 arithmetic.
    q_ref_bf16 = reference_forward_bf16(state, action, kparams)
    assert jnp.allclose(q, q_ref_bf16, atol=2e-3, rtol=2e-3)

    # Loose check against the pure-f32 PyTorch-equivalent math (bf16 input cast).
    q_ref_f32 = reference_forward_f32(state, action, params)
    assert jnp.allclose(q, q_ref_f32, atol=5e-2, rtol=5e-2)

    # --- larger, non-multiple batch: exercises the >=2-step grid and the
    #     ragged (masked) last block with no wrapper padding ---
    batch2 = 300
    state2 = jax.random.normal(ks2, (batch2, input_dims), jnp.float32)
    action2 = jax.random.normal(ka2, (batch2, n_actions), jnp.float32)
    q2 = jax.block_until_ready(critic_forward(state2, action2, kparams))
    assert q2.shape == (batch2, 1)
    q2_ref_bf16 = reference_forward_bf16(state2, action2, kparams)
    assert jnp.allclose(q2, q2_ref_bf16, atol=2e-3, rtol=2e-3)

    print("KERNEL_OK")
</pallas_src>

<mosaic_0001>
module attributes {stable_mosaic.version = 11 : i64} {
  func.func @critic_kernel(%arg0: i32, %arg1: memref<2x8xf32, #tpu.memory_space<vmem>>, %arg2: memref<2x4xf32, #tpu.memory_space<vmem>>, %arg3: memref<8x32xbf16, #tpu.memory_space<vmem>>, %arg4: memref<4x32xbf16, #tpu.memory_space<vmem>>, %arg5: memref<1x32xf32, #tpu.memory_space<vmem>>, %arg6: memref<32x32xbf16, #tpu.memory_space<vmem>>, %arg7: memref<1x32xf32, #tpu.memory_space<vmem>>, %arg8: memref<1x32xf32, #tpu.memory_space<vmem>>, %arg9: memref<1x1xf32, #tpu.memory_space<smem>>, %arg10: memref<2x1xf32, #tpu.memory_space<vmem>>) attributes {dimension_semantics = [#tpu.dimension_semantics<parallel>], iteration_bounds = array<i64: 1>, scalar_prefetch = 0 : i64, scratch_operands = 0 : i64, tpu.core_type = #tpu.core_type<tc>, window_params = [{transform_indices = @transform_0, window_bounds = array<i64: 2, 8>}, {transform_indices = @transform_1, window_bounds = array<i64: 2, 4>}, {pipeline_mode = #tpu.pipeline_mode<synchronous>, transform_indices = @transform_2, window_bounds = array<i64: 8, 32>}, {pipeline_mode = #tpu.pipeline_mode<synchronous>, transform_indices = @transform_3, window_bounds = array<i64: 4, 32>}, {pipeline_mode = #tpu.pipeline_mode<synchronous>, transform_indices = @transform_4, window_bounds = array<i64: 1, 32>}, {pipeline_mode = #tpu.pipeline_mode<synchronous>, transform_indices = @transform_5, window_bounds = array<i64: 32, 32>}, {pipeline_mode = #tpu.pipeline_mode<synchronous>, transform_indices = @transform_6, window_bounds = array<i64: 1, 32>}, {pipeline_mode = #tpu.pipeline_mode<synchronous>, transform_indices = @transform_7, window_bounds = array<i64: 1, 32>}, {transform_indices = @transform_8, window_bounds = array<i64: 1, 1>}, {transform_indices = @transform_9, window_bounds = array<i64: 2, 1>}]} {
    %c0 = arith.constant 0 : index
    %c0_0 = arith.constant 0 : index
    %0 = vector.load %arg1[%c0, %c0_0] : memref<2x8xf32, #tpu.memory_space<vmem>>, vector<2x8xf32>
    %1 = arith.truncf %0 : vector<2x8xf32> to vector<2x8xbf16>
    %c0_1 = arith.constant 0 : index
    %c0_2 = arith.constant 0 : index
    %2 = vector.load %arg2[%c0_1, %c0_2] : memref<2x4xf32, #tpu.memory_space<vmem>>, vector<2x4xf32>
    %3 = arith.truncf %2 : vector<2x4xf32> to vector<2x4xbf16>
    %c0_3 = arith.constant 0 : index
    %c0_4 = arith.constant 0 : index
    %4 = vector.load %arg3[%c0_3, %c0_4] : memref<8x32xbf16, #tpu.memory_space<vmem>>, vector<8x32xbf16>
    %cst = arith.constant dense<0.000000e+00> : vector<2x32xf32>
    %5 = tpu.matmul %1, %4, %cst {dimension_numbers = #tpu.dot_dimension_numbers<[1], [0], [0], [1], [0, 0, 1, 1], [], []>} : vector<2x8xbf16>, vector<8x32xbf16>, vector<2x32xf32> -> vector<2x32xf32>
    %c0_5 = arith.constant 0 : index
    %c0_6 = arith.constant 0 : index
    %6 = vector.load %arg4[%c0_5, %c0_6] : memref<4x32xbf16, #tpu.memory_space<vmem>>, vector<4x32xbf16>
    %cst_7 = arith.constant dense<0.000000e+00> : vector<2x32xf32>
    %7 = tpu.matmul %3, %6, %cst_7 {dimension_numbers = #tpu.dot_dimension_numbers<[1], [0], [0], [1], [0, 0, 1, 1], [], []>} : vector<2x4xbf16>, vector<4x32xbf16>, vector<2x32xf32> -> vector<2x32xf32>
    %8 = arith.addf %5, %7 : vector<2x32xf32>
    %c0_8 = arith.constant 0 : index
    %c0_9 = arith.constant 0 : index
    %9 = vector.load %arg5[%c0_8, %c0_9] : memref<1x32xf32, #tpu.memory_space<vmem>>, vector<1x32xf32>
    %10 = vector.broadcast %9 : vector<1x32xf32> to vector<2x32xf32>
    %11 = arith.addf %8, %10 : vector<2x32xf32>
    %cst_10 = arith.constant 0.000000e+00 : f32
    %12 = vector.broadcast %cst_10 : f32 to vector<2x32xf32>
    %13 = arith.maximumf %11, %12 : vector<2x32xf32>
    %14 = arith.truncf %13 : vector<2x32xf32> to vector<2x32xbf16>
    %c0_11 = arith.constant 0 : index
    %c0_12 = arith.constant 0 : index
    %15 = vector.load %arg6[%c0_11, %c0_12] : memref<32x32xbf16, #tpu.memory_space<vmem>>, vector<32x32xbf16>
    %cst_13 = arith.constant dense<0.000000e+00> : vector<2x32xf32>
    %16 = tpu.matmul %14, %15, %cst_13 {dimension_numbers = #tpu.dot_dimension_numbers<[1], [0], [0], [1], [0, 0, 1, 1], [], []>} : vector<2x32xbf16>, vector<32x32xbf16>, vector<2x32xf32> -> vector<2x32xf32>
    %c0_14 = arith.constant 0 : index
    %c0_15 = arith.constant 0 : index
    %17 = vector.load %arg7[%c0_14, %c0_15] : memref<1x32xf32, #tpu.memory_space<vmem>>, vector<1x32xf32>
    %18 = vector.broadcast %17 : vector<1x32xf32> to vector<2x32xf32>
    %19 = arith.addf %16, %18 : vector<2x32xf32>
    %cst_16 = arith.constant 0.000000e+00 : f32
    %20 = vector.broadcast %cst_16 : f32 to vector<2x32xf32>
    %21 = arith.maximumf %19, %20 : vector<2x32xf32>
    %c0_17 = arith.constant 0 : index
    %c0_18 = arith.constant 0 : index
    %22 = vector.load %arg8[%c0_17, %c0_18] : memref<1x32xf32, #tpu.memory_space<vmem>>, vector<1x32xf32>
    %23 = vector.broadcast %22 : vector<1x32xf32> to vector<2x32xf32>
    %24 = arith.mulf %21, %23 : vector<2x32xf32>
    %cst_19 = arith.constant dense<0.000000e+00> : vector<2xf32>
    %25 = vector.multi_reduction <add>, %24, %cst_19 [1] : vector<2x32xf32> to vector<2xf32>
    %26 = vector.shape_cast %25 : vector<2xf32> to vector<2x1xf32>
    %c0_20 = arith.constant 0 : index
    %c0_21 = arith.constant 0 : index
    %27 = memref.load %arg9[%c0_20, %c0_21] : memref<1x1xf32, #tpu.memory_space<smem>>
    %28 = vector.broadcast %27 : f32 to vector<2x1xf32>
    %29 = arith.addf %26, %28 : vector<2x1xf32>
    %c0_22 = arith.constant 0 : index
    %c0_23 = arith.constant 0 : index
    %30 = vector.load %arg10[%c0_22, %c0_23] : memref<2x1xf32, #tpu.memory_space<vmem>>, vector<2x1xf32>
    tpu.vector_store %arg10[%c0_22, %c0_23], %29 {strides = array<i32>} : memref<2x1xf32, #tpu.memory_space<vmem>>, vector<2x1xf32>,
    return
  }
  func.func @transform_0(%arg0: i32) -> (i32, i32) {
    %c0_i32 = arith.constant 0 : i32
    %c0_i32_0 = arith.constant 0 : i32
    return %arg0, %c0_i32 : i32, i32
  }
  func.func @transform_1(%arg0: i32) -> (i32, i32) {
    %c0_i32 = arith.constant 0 : i32
    %c0_i32_0 = arith.constant 0 : i32
    return %arg0, %c0_i32 : i32, i32
  }
  func.func @transform_2(%arg0: i32) -> (i32, i32) {
    %c0_i32 = arith.constant 0 : i32
    %c0_i32_0 = arith.constant 0 : i32
    %c0_i32_1 = arith.constant 0 : i32
    return %c0_i32, %c0_i32_0 : i32, i32
  }
  func.func @transform_3(%arg0: i32) -> (i32, i32) {
    %c0_i32 = arith.constant 0 : i32
    %c0_i32_0 = arith.constant 0 : i32
    %c0_i32_1 = arith.constant 0 : i32
    return %c0_i32, %c0_i32_0 : i32, i32
  }
  func.func @transform_4(%arg0: i32) -> (i32, i32) {
    %c0_i32 = arith.constant 0 : i32
    %c0_i32_0 = arith.constant 0 : i32
    %c0_i32_1 = arith.constant 0 : i32
    return %c0_i32, %c0_i32_0 : i32, i32
  }
  func.func @transform_5(%arg0: i32) -> (i32, i32) {
    %c0_i32 = arith.constant 0 : i32
    %c0_i32_0 = arith.constant 0 : i32
    %c0_i32_1 = arith.constant 0 : i32
    return %c0_i32, %c0_i32_0 : i32, i32
  }
  func.func @transform_6(%arg0: i32) -> (i32, i32) {
    %c0_i32 = arith.constant 0 : i32
    %c0_i32_0 = arith.constant 0 : i32
    %c0_i32_1 = arith.constant 0 : i32
    return %c0_i32, %c0_i32_0 : i32, i32
  }
  func.func @transform_7(%arg0: i32) -> (i32, i32) {
    %c0_i32 = arith.constant 0 : i32
    %c0_i32_0 = arith.constant 0 : i32
    %c0_i32_1 = arith.constant 0 : i32
    return %c0_i32, %c0_i32_0 : i32, i32
  }
  func.func @transform_8(%arg0: i32) -> (i32, i32) {
    %c0_i32 = arith.constant 0 : i32
    %c0_i32_0 = arith.constant 0 : i32
    %c0_i32_1 = arith.constant 0 : i32
    return %c0_i32, %c0_i32_0 : i32, i32
  }
  func.func @transform_9(%arg0: i32) -> (i32, i32) {
    %c0_i32 = arith.constant 0 : i32
    %c0_i32_0 = arith.constant 0 : i32
    return %arg0, %c0_i32 : i32, i32
  }
}

</mosaic_0001>

<llo_original>
// kernel: tpu_custom_call.1
$region0: #{tpu_custom_call.1}
  #allocation0 [shape = 'u32[]', space=smem, size = 0x4, offset = 0x4, fixed_abs, tag = 'smem constant byte address 0x4 - core index']
  #allocation1 [shape = 'u32[144,128]{1,0:T(1,128)}', space=vmem, size = 0x12000, scoped, tag = 'internal scratch']
  #allocation2 [shape = 'f32[1,1]{1,0:T(1,128)S(6)}', space=smem, size = 0x200, scoped, tag = 'scoped memory for tpu_custom_call.1']
  %s0 = inlined_call_operand.vmem [shape: f32[2,8], index: 0, kind: input, shape index: {}]
  %s1 = inlined_call_operand.hbm [shape: f32[2,4], index: 1, kind: input, shape index: {}]
  %s2 = inlined_call_operand.vmem [shape: bf16[8,32], index: 2, kind: input, shape index: {}]
  %s3 = inlined_call_operand.hbm [shape: bf16[4,32], index: 3, kind: input, shape index: {}]
  %s4 = inlined_call_operand.hbm [shape: f32[1,32], index: 4, kind: input, shape index: {}]
  %s5 = inlined_call_operand.vmem [shape: bf16[32,32], index: 5, kind: input, shape index: {}]
  %s6 = inlined_call_operand.vmem [shape: f32[1,32], index: 6, kind: input, shape index: {}]
  %s7 = inlined_call_operand.vmem [shape: f32[1,32], index: 7, kind: input, shape index: {}]
  %s8 = inlined_call_operand.<no memory space> [shape: f32[1,1], index: 8, kind: input, shape index: {}]
  %s9 = inlined_call_operand.vmem [shape: f32[2,1], index: 9, kind: output, shape index: {}]
  %s10 = sld [smem:[#allocation0]]
  $region58: #{tpu_custom_call.1} parent=0
    _
  %s12 = ssub.s32 1, %s10
  %s13 = scalar_select 0, %s12, %s10
  %14 = sst [smem:[#allocation2]] %s8
  $region1: #{tpu_custom_call.1} parent=0
    #allocation3 [shape = 'u8[1024]{0}', space=vmem, size = 0x400, scoped, tag = 'input window, operand 1, single buffered']
    #allocation4 [shape = 's32[1]{0}', space=sflag, size = 0x4, scoped, tag = 'scoped memory for tpu_custom_call.1']
    #allocation5 [shape = 'u8[1024]{0}', space=vmem, size = 0x400, scoped, tag = 'input window, operand 3, single buffered']
    #allocation6 [shape = 's32[1]{0}', space=sflag, size = 0x4, scoped, tag = 'scoped memory for tpu_custom_call.1']
    #allocation7 [shape = 'u8[512]{0}', space=vmem, size = 0x400, scoped, tag = 'input window, operand 4, single buffered']
    %15 = vsyncpa [#allocation4], 0
    %16 = vsyncpa [#allocation6], 0
    // Predicated region
    $region2: #{tpu_custom_call.1} parent=1 // pred_check
      _
    $region3: #{tpu_custom_call.1} parent=1 // pred_check_branch
      %18 = sbr.rel (0) target = $region5
    $region4: #{tpu_custom_call.1} parent=1 // pred_region
      _
    $region5: #{tpu_custom_call.1} parent=1 // pred_fallthru
      _
    // Predicated region
    $region6: #{tpu_custom_call.1} parent=1 // pred_check
      _
    $region7: #{tpu_custom_call.1} parent=1 // pred_check_branch
      %20 = sbr.rel (0) target = $region9
    $region8: #{tpu_custom_call.1} parent=1 // pred_region
      %s22 = ssub.s32 32, 32
      %23 = vsyncadd [#allocation4], %s22
      %s25 = sshll.u32 [#allocation3], 4
      %s26 = int_to_ptr.vmem [resolvable:$true] %s25
      %28 = dma.hbm_to_vmem [thread:$0]  %s1, 32, %s26, [#allocation4]
    $region9: #{tpu_custom_call.1} parent=1 // pred_fallthru
      _
    // Predicated region
    $region10: #{tpu_custom_call.1} parent=1 // pred_check
      _
    $region11: #{tpu_custom_call.1} parent=1 // pred_check_branch
      %30 = sbr.rel (0) target = $region13
    $region12: #{tpu_custom_call.1} parent=1 // pred_region
      _
    $region13: #{tpu_custom_call.1} parent=1 // pred_fallthru
      _
    // Predicated region
    $region14: #{tpu_custom_call.1} parent=1 // pred_check
      _
    $region15: #{tpu_custom_call.1} parent=1 // pred_check_branch
      %32 = sbr.rel (0) target = $region17
    $region16: #{tpu_custom_call.1} parent=1 // pred_region
      %s34 = ssub.s32 32, 32
      %35 = vsyncadd [#allocation6], %s34
      %s37 = sshll.u32 [#allocation5], 4
      %s38 = int_to_ptr.vmem [resolvable:$true] %s37
      %40 = dma.hbm_to_vmem [thread:$0]  %s3, 32, %s38, [#allocation6]
    $region17: #{tpu_custom_call.1} parent=1 // pred_fallthru
      _
    // Predicated region
    $region18: #{tpu_custom_call.1} parent=1 // pred_check
      _
    $region19: #{tpu_custom_call.1} parent=1 // pred_check_branch
      %42 = sbr.rel (0) target = $region21
    $region20: #{tpu_custom_call.1} parent=1 // pred_region
      %s44 = ssub.s32 16, 16
      %45 = vsyncadd [#allocation6], %s44
      %s47 = sshll.u32 [#allocation7], 4
      %s48 = int_to_ptr.vmem [resolvable:$true] %s47
      %50 = dma.hbm_to_vmem [thread:$0]  %s4, 16, %s48, [#allocation6]
    $region21: #{tpu_custom_call.1} parent=1 // pred_fallthru
      _
    // Predicated region
    $region22: #{tpu_custom_call.1} parent=1 // pred_check
      _
    $region23: #{tpu_custom_call.1} parent=1 // pred_check_branch
      %52 = sbr.rel (0) target = $region25
    $region24: #{tpu_custom_call.1} parent=1 // pred_region
      _
    $region25: #{tpu_custom_call.1} parent=1 // pred_fallthru
      _
    // Predicated region
    $region26: #{tpu_custom_call.1} parent=1 // pred_check
      _
    $region27: #{tpu_custom_call.1} parent=1 // pred_check_branch
      %54 = sbr.rel (0) target = $region29
    $region28: #{tpu_custom_call.1} parent=1 // pred_region
      _
    $region29: #{tpu_custom_call.1} parent=1 // pred_fallthru
      _
    // Predicated region
    $region30: #{tpu_custom_call.1} parent=1 // pred_check
      _
    $region31: #{tpu_custom_call.1} parent=1 // pred_check_branch
      %56 = sbr.rel (0) target = $region33
    $region32: #{tpu_custom_call.1} parent=1 // pred_region
      _
    $region33: #{tpu_custom_call.1} parent=1 // pred_fallthru
      _
    // Predicated region
    $region34: #{tpu_custom_call.1} parent=1 // pred_check
      _
    $region35: #{tpu_custom_call.1} parent=1 // pred_check_branch
      %58 = sbr.rel (0) target = $region37
    $region36: #{tpu_custom_call.1} parent=1 // pred_region
      _
    $region37: #{tpu_custom_call.1} parent=1 // pred_fallthru
      _
    // Predicated region
    $region38: #{tpu_custom_call.1} parent=1 // pred_check
      _
    $region39: #{tpu_custom_call.1} parent=1 // pred_check_branch
      %60 = sbr.rel (0) target = $region41
    $region40: #{tpu_custom_call.1} parent=1 // pred_region
      %61 = dma.done [#allocation4], 32
    $region41: #{tpu_custom_call.1} parent=1 // pred_fallthru
      _
    // Predicated region
    $region42: #{tpu_custom_call.1} parent=1 // pred_check
      _
    $region43: #{tpu_custom_call.1} parent=1 // pred_check_branch
      %63 = sbr.rel (0) target = $region45
    $region44: #{tpu_custom_call.1} parent=1 // pred_region
      %64 = dma.done [#allocation6], 32
    $region45: #{tpu_custom_call.1} parent=1 // pred_fallthru
      _
    // Predicated region
    $region46: #{tpu_custom_call.1} parent=1 // pred_check
      _
    $region47: #{tpu_custom_call.1} parent=1 // pred_check_branch
      %66 = sbr.rel (0) target = $region49
    $region48: #{tpu_custom_call.1} parent=1 // pred_region
      %67 = dma.done [#allocation6], 16
    $region49: #{tpu_custom_call.1} parent=1 // pred_fallthru
      _
    %v69 = vld [vmem:[%s0] sm:$0x3]
    %v70 = vpack.c.bf16 %v69, %v69
    %v71 = vld [vmem:[#allocation3] sm:$0x3]
    %v72 = vpack.c.bf16 %v71, %v71
    %v73 = vld [vmem:[%s2] sm:$0xf]
    %v74 = vld [vmem:[#allocation5] sm:$0x3]
    %vm75 = vcmask 31744
    %v77 = vsel %vm75, %v72, 0
    %vm79 = vcmask 1041408
    %v81 = vsel %vm79, %v74, 0
    %83 = vmatprep.subr.bf16.mxu0 0
    %84 = vmatpush1.bf16.msra.mxu0 %v81
    %85 = vmatprep.subr.bf16.mxu0 0
    %86 = vmatpush1.bf16.msra.mxu0 0
    %87 = vmatprep.subr.bf16.mxu0 0
    %88 = vmatpush1.bf16.msra.mxu0 0
    %89 = vmatprep.subr.bf16.mxu0 0
    %90 = vmatpush1.bf16.msra.mxu0 0
    %91 = vmatprep.subr.bf16.mxu0 0
    %92 = vmatpush1.bf16.msra.mxu0 0
    %93 = vmatprep.subr.bf16.mxu0 0
    %94 = vmatpush1.bf16.msra.mxu0 0
    %95 = vmatprep.subr.bf16.mxu0 0
    %96 = vmatpush1.bf16.msra.mxu0 0
    %97 = vmatprep.subr.bf16.mxu0 0
    %98 = vmatpush1.bf16.msra.mxu0 0
    %99 = vmatprep.subr.bf16.mxu0 0
    %100 = vmatpush1.bf16.msra.mxu0 0
    %101 = vmatprep.subr.bf16.mxu0 0
    %102 = vmatpush1.bf16.msra.mxu0 0
    %103 = vmatprep.subr.bf16.mxu0 0
    %104 = vmatpush1.bf16.msra.mxu0 0
    %105 = vmatprep.subr.bf16.mxu0 0
    %106 = vmatpush1.bf16.msra.mxu0 0
    %107 = vmatprep.subr.bf16.mxu0 0
    %108 = vmatpush1.bf16.msra.mxu0 0
    %109 = vmatprep.subr.bf16.mxu0 0
    %110 = vmatpush1.bf16.msra.mxu0 0
    %111 = vmatprep.subr.bf16.mxu0 0
    %112 = vmatpush1.bf16.msra.mxu0 0
    %113 = vmatprep.subr.bf16.mxu0 0
    %114 = vmatpush1.bf16.msra.mxu0 0
    %115 = vmatprep.mubr.bf16.mxu0 0
    %116 = vmatmul.mubr.bf16.gmra.mrb[0].mxu0 %v77
    %v117 = vpop.f32.mrb[0].mxu0
    %v118 = vadd.f32 0.0, %v117
    %v119 = vpop.f32.mrb[0].mxu0
    %v120 = vpop.f32.mrb[0].mxu0
    %v121 = vpop.f32.mrb[0].mxu0
    %122 = vdwg.mxu0
    %vm123 = vcmask 64512
    %v125 = vsel %vm123, %v70, 0
    %vm127 = vcmask 1043456
    %v129 = vsel %vm127, %v73, 0
    %131 = vmatprep.subr.bf16.mxu0 0
    %132 = vmatpush1.bf16.msra.mxu0 %v129
    %133 = vmatprep.subr.bf16.mxu0 0
    %134 = vmatpush1.bf16.msra.mxu0 0
    %135 = vmatprep.subr.bf16.mxu0 0
    %136 = vmatpush1.bf16.msra.mxu0 0
    %137 = vmatprep.subr.bf16.mxu0 0
    %138 = vmatpush1.bf16.msra.mxu0 0
    %139 = vmatprep.subr.bf16.mxu0 0
    %140 = vmatpush1.bf16.msra.mxu0 0
    %141 = vmatprep.subr.bf16.mxu0 0
    %142 = vmatpush1.bf16.msra.mxu0 0
    %143 = vmatprep.subr.bf16.mxu0 0
    %144 = vmatpush1.bf16.msra.mxu0 0
    %145 = vmatprep.subr.bf16.mxu0 0
    %146 = vmatpush1.bf16.msra.mxu0 0
    %147 = vmatprep.subr.bf16.mxu0 0
    %148 = vmatpush1.bf16.msra.mxu0 0
    %149 = vmatprep.subr.bf16.mxu0 0
    %150 = vmatpush1.bf16.msra.mxu0 0
    %151 = vmatprep.subr.bf16.mxu0 0
    %152 = vmatpush1.bf16.msra.mxu0 0
    %153 = vmatprep.subr.bf16.mxu0 0
    %154 = vmatpush1.bf16.msra.mxu0 0
    %155 = vmatprep.subr.bf16.mxu0 0
    %156 = vmatpush1.bf16.msra.mxu0 0
    %157 = vmatprep.subr.bf16.mxu0 0
    %158 = vmatpush1.bf16.msra.mxu0 0
    %159 = vmatprep.subr.bf16.mxu0 0
    %160 = vmatpush1.bf16.msra.mxu0 0
    %161 = vmatprep.subr.bf16.mxu0 0
    %162 = vmatpush1.bf16.msra.mxu0 0
    %163 = vmatprep.mubr.bf16.mxu0 0
    %164 = vmatmul.mubr.bf16.gmra.mrb[0].mxu0 %v125
    %v165 = vpop.f32.mrb[0].mxu0
    %v166 = vadd.f32 %v118, %v165
    %v167 = vpop.f32.mrb[0].mxu0
    %v168 = vpop.f32.mrb[0].mxu0
    %v169 = vpop.f32.mrb[0].mxu0
    %170 = vdwg.mxu0
    %v171 = vld [vmem:[#allocation7] sm:$0x1]
    %v173 = vlaneseq
    %v174 = vshrl.u32 %v173, 7
    %v175 = vsub.s32 0, %v174
    %v176 = vrot.slane %v171, %v175
    %v178 = vadd.f32 %v166, %v176
    %v179 = vmax.f32 %v178, 0.0
    %v180 = vpack.c.bf16 %v179, %v179
    %v181 = vld [vmem:[%s5] sm:$0xf]
    %v182 = vld [vmem:[%s5 + $0x4] sm:$0xf]
    %v183 = vld [vmem:[%s5 + $0x8] sm:$0xf]
    %v184 = vld [vmem:[%s5 + $0xc] sm:$0xf]
    %v185 = vld [vmem:[%s6] sm:$0x1]
    %v187 = vlaneseq
    %v188 = vshrl.u32 %v187, 7
    %v189 = vsub.s32 0, %v188
    %v190 = vrot.slane %v185, %v189
    %v196 = vunpack.c.l.b16 %v181
    %v197 = vunpack.c.l.b16 %v182
    %v198 = vunpack.c.l.b16 %v183
    %v199 = vunpack.c.l.b16 %v184
    %v200 = vpack.c.b16 %v197, %v196
    %v201 = vpack.c.b16 %v199, %v198
    %vm204 = vcmask 261120
    %v206 = vsel %vm204, %v180, 0
    %208 = vmatprep.subr.bf16.mxu0 0
    %209 = vmatpush1.bf16.msra.mxu0 %v200
    %210 = vmatprep.subr.bf16.mxu0 0
    %211 = vmatpush1.bf16.msra.mxu0 %v201
    %212 = vmatprep.subr.bf16.mxu0 0
    %213 = vmatpush1.bf16.msra.mxu0 0
    %214 = vmatprep.subr.bf16.mxu0 0
    %215 = vmatpush1.bf16.msra.mxu0 0
    %216 = vmatprep.subr.bf16.mxu0 0
    %217 = vmatpush1.bf16.msra.mxu0 0
    %218 = vmatprep.subr.bf16.mxu0 0
    %219 = vmatpush1.bf16.msra.mxu0 0
    %220 = vmatprep.subr.bf16.mxu0 0
    %221 = vmatpush1.bf16.msra.mxu0 0
    %222 = vmatprep.subr.bf16.mxu0 0
    %223 = vmatpush1.bf16.msra.mxu0 0
    %224 = vmatprep.subr.bf16.mxu0 0
    %225 = vmatpush1.bf16.msra.mxu0 0
    %226 = vmatprep.subr.bf16.mxu0 0
    %227 = vmatpush1.bf16.msra.mxu0 0
    %228 = vmatprep.subr.bf16.mxu0 0
    %229 = vmatpush1.bf16.msra.mxu0 0
    %230 = vmatprep.subr.bf16.mxu0 0
    %231 = vmatpush1.bf16.msra.mxu0 0
    %232 = vmatprep.subr.bf16.mxu0 0
    %233 = vmatpush1.bf16.msra.mxu0 0
    %234 = vmatprep.subr.bf16.mxu0 0
    %235 = vmatpush1.bf16.msra.mxu0 0
    %236 = vmatprep.subr.bf16.mxu0 0
    %237 = vmatpush1.bf16.msra.mxu0 0
    %238 = vmatprep.subr.bf16.mxu0 0
    %239 = vmatpush1.bf16.msra.mxu0 0
    %240 = vmatprep.mubr.bf16.mxu0 0
    %241 = vmatmul.mubr.bf16.gmra.mrb[0].mxu0 %v206
    %v242 = vpop.f32.mrb[0].mxu0
    %v243 = vadd.f32 %v190, %v242
    %v244 = vpop.f32.mrb[0].mxu0
    %v245 = vpop.f32.mrb[0].mxu0
    %v246 = vpop.f32.mrb[0].mxu0
    %247 = vdwg.mxu0
    %v248 = vmax.f32 %v243, 0.0
    %v249 = vld [vmem:[%s7] sm:$0x1]
    %v251 = vlaneseq
    %v252 = vshrl.u32 %v251, 7
    %v253 = vsub.s32 0, %v252
    %v254 = vrot.slane %v249, %v253
    %v256 = vmul.f32 %v248, %v254
    %vm257 = vcmask 254976
    %v258 = vsel %vm257, %v256, 0.0
    %259 = vadd.xlane.f32.xlu0 %v258
    %v260 = vpop.xlane.xlu0 %259
    %s261 = sld [smem:[#allocation2]]
    %v262 = vstv %s261
    %v263 = vadd.f32 %v260, %v262
    %vm264 = vcmask 1024
    %265 = vst.msk [vmem:[%s9] sm:$0x3] %vm264, %v263
    // Predicated region
    $region50: #{tpu_custom_call.1} parent=1 // pred_check
      _
    $region51: #{tpu_custom_call.1} parent=1 // pred_check_branch
      %267 = sbr.rel (0) target = $region53
    $region52: #{tpu_custom_call.1} parent=1 // pred_region
      _
    $region53: #{tpu_custom_call.1} parent=1 // pred_fallthru
      _
    // Predicated region
    $region54: #{tpu_custom_call.1} parent=1 // pred_check
      _
    $region55: #{tpu_custom_call.1} parent=1 // pred_check_branch
      %269 = sbr.rel (0) target = $region57
    $region56: #{tpu_custom_call.1} parent=1 // pred_region
      _
    $region57: #{tpu_custom_call.1} parent=1 // pred_fallthru
      _
    %270 = vsyncpa [#allocation4], 1
    %271 = vsyncpa [#allocation6], 1

</llo_original>
